<compile_context>
chip_gen: v7x
topology: tpu7x:2x2x1
jax: 0.10.0
libtpu: 0.0.40
codegen_flags: <defaults>
</compile_context>

<pallas_src>
import numpy as np
import jax
import jax.numpy as jnp
from jax.experimental import pallas as pl
from jax.experimental.pallas import tpu as pltpu


# ---------------------------------------------------------------------------
# Primary path: zero-traffic aliased pass-through.
# ---------------------------------------------------------------------------
def _passthrough_kernel(x_ref, o_ref):
    # forward(x) == x.  The output buffer is aliased to the input buffer
    # (input_output_aliases={0: 0}), so the identity holds without moving a
    # single byte HBM<->VMEM.  touch() keeps a dependency on the output ref so
    # the (otherwise empty) kernel is not elided.
    del x_ref
    pltpu.touch(o_ref)


def _passthrough_call(x: jax.Array) -> jax.Array:
    return pl.pallas_call(
        _passthrough_kernel,
        out_shape=jax.ShapeDtypeStruct(x.shape, x.dtype),
        in_specs=[pl.BlockSpec(memory_space=pl.ANY)],   # leave in HBM, no auto-DMA
        out_specs=pl.BlockSpec(memory_space=pl.ANY),
        input_output_aliases={0: 0},                    # output buffer == input buffer
        compiler_params=pltpu.CompilerParams(has_side_effects=True),
    )(x)


# ---------------------------------------------------------------------------
# Fallback path: lane-dense tiled VMEM copy (only used if the zero-traffic
# path is unavailable on the running toolchain; selected by a one-time probe).
# ---------------------------------------------------------------------------
_TARGET_BLOCK_BYTES = 8 * 1024 * 1024   # 8 MiB blocks: in+out double-buffered = 32 MiB
_SMALL_BYTES = 8 * 1024 * 1024          # single-block fast path threshold
_VMEM_LIMIT_BYTES = 48 << 20            # > 32 MiB live buffers, < 64 MiB v7x VMEM


def _sublane_multiple(dtype) -> int:
    """Sublane packing multiple (8 f32 / 16 bf16 / 32 int8)."""
    itemsize = jnp.dtype(dtype).itemsize
    if itemsize >= 4:
        return 8
    if itemsize == 2:
        return 16
    return 32


def _lane_dense_2d(total_elems: int, shape):
    """(rows, cols) with cols a multiple of 128 whenever the size allows it."""
    if total_elems % 128 == 0:
        cols = 128
        while total_elems % (cols * 2) == 0 and cols * 2 <= 16384:
            cols *= 2
        return total_elems // cols, cols
    # Awkward sizes (not 128-divisible) keep the original last dim; the primary
    # zero-traffic path handles these shapes without any layout concerns.
    rows = 1
    for d in shape[:-1]:
        rows *= d
    return max(rows, 1), shape[-1]


def _copy_kernel(x_ref, o_ref):
    o_ref[...] = x_ref[...]


def _tiled_copy_call(x: jax.Array) -> jax.Array:
    orig_shape = x.shape
    if x.ndim == 0:
        x = x.reshape(1, 1)
    total = x.size
    itemsize = jnp.dtype(x.dtype).itemsize
    rows, cols = _lane_dense_2d(total, x.shape)
    x2d = x.reshape(rows, cols)

    sub = _sublane_multiple(x.dtype)
    if total * itemsize <= _SMALL_BYTES or rows <= sub:
        tm = rows                       # one block, no per-grid-step overhead
    else:
        tm = max(sub, _TARGET_BLOCK_BYTES // (cols * itemsize))
        tm = max(sub, (tm // sub) * sub)
        tm = min(tm, rows)
    grid = (pl.cdiv(rows, tm),)

    out2d = pl.pallas_call(
        _copy_kernel,
        out_shape=jax.ShapeDtypeStruct((rows, cols), x2d.dtype),
        grid_spec=pltpu.PrefetchScalarGridSpec(
            num_scalar_prefetch=0,
            grid=grid,
            in_specs=[pl.BlockSpec((tm, cols), lambda i: (i, 0))],
            out_specs=pl.BlockSpec((tm, cols), lambda i: (i, 0)),
        ),
        input_output_aliases={0: 0},
        compiler_params=pltpu.CompilerParams(
            dimension_semantics=("parallel",),   # megacore split on v7x
            vmem_limit_bytes=_VMEM_LIMIT_BYTES,
        ),
    )(x2d)
    return out2d.reshape(orig_shape)


# ---------------------------------------------------------------------------
# Public entry point.  The argument is donated so the alias actually removes
# the defensive input copy (true zero-traffic).
# ---------------------------------------------------------------------------
_passthrough_jit = jax.jit(_passthrough_call, donate_argnums=0)
_tiled_copy_jit = jax.jit(_tiled_copy_call, donate_argnums=0)

_IMPL = None


def _select_impl():
    """One-time probe: prefer the zero-traffic pass-through, verified by value."""
    global _IMPL
    if _IMPL is None:
        try:
            probe = jnp.arange(8 * 256, dtype=jnp.float32).reshape(8, 256)
            expected = np.asarray(probe)                 # snapshot before donation
            got = np.asarray(jax.block_until_ready(_passthrough_jit(probe)))
            _IMPL = _passthrough_jit if np.array_equal(got, expected) else _tiled_copy_jit
        except Exception:
            _IMPL = _tiled_copy_jit
    return _IMPL


def general_network_forward(x: jax.Array) -> jax.Array:
    """Identity forward pass of GeneralNetwork as a Pallas TPU kernel.

    NOTE: the argument is donated (the output aliases its buffer); do not read
    `x` after this call — snapshot it first if you need the original values.
    """
    return _select_impl()(x)


if __name__ == "__main__":
    key = jax.random.PRNGKey(0)
    # Small CIFAR-like input: batch=2, channels=4, spatial=16x16 (NCHW).
    x = jax.random.normal(key, (2, 4, 16, 16), dtype=jnp.float32)
    x_expected = np.asarray(x)            # snapshot: x is donated below

    y = general_network_forward(x)
    y = jax.block_until_ready(y)

    # Verify identity semantics exactly.
    assert y.shape == x_expected.shape
    assert y.dtype == x_expected.dtype
    assert np.array_equal(np.asarray(y), x_expected)
    print("KERNEL_OK")
</pallas_src>

<mosaic_0001>
module attributes {stable_mosaic.version = 11 : i64} {
  func.func @_passthrough_kernel(%arg0: memref<8x256xf32, #tpu.memory_space<any>>, %arg1: memref<8x256xf32, #tpu.memory_space<any>>) attributes {dimension_semantics = [], scalar_prefetch = 0 : i64, scratch_operands = 0 : i64, tpu.core_type = #tpu.core_type<tc>} {
    return
  }
}

module attributes {stable_mosaic.version = 11 : i64} {
  func.func @_copy_kernel(%arg0: i32, %arg1: memref<1x2048xf32, #tpu.memory_space<vmem>>, %arg2: memref<1x2048xf32, #tpu.memory_space<vmem>>) attributes {dimension_semantics = [#tpu.dimension_semantics<parallel>], iteration_bounds = array<i64: 1>, scalar_prefetch = 0 : i64, scratch_operands = 0 : i64, tpu.core_type = #tpu.core_type<tc>, window_params = [{transform_indices = @transform_0, window_bounds = array<i64: 1, 2048>}, {transform_indices = @transform_1, window_bounds = array<i64: 1, 2048>}]} {
    %c0 = arith.constant 0 : index
    %c0_0 = arith.constant 0 : index
    %0 = vector.load %arg1[%c0, %c0_0] : memref<1x2048xf32, #tpu.memory_space<vmem>>, vector<1x2048xf32>
    %c0_1 = arith.constant 0 : index
    %c0_2 = arith.constant 0 : index
    %1 = vector.load %arg2[%c0_1, %c0_2] : memref<1x2048xf32, #tpu.memory_space<vmem>>, vector<1x2048xf32>
    tpu.vector_store %arg2[%c0_1, %c0_2], %0 {strides = array<i32>} : memref<1x2048xf32, #tpu.memory_space<vmem>>, vector<1x2048xf32>,
    return
  }
  func.func @transform_0(%arg0: i32) -> (i32, i32) {
    %c0_i32 = arith.constant 0 : i32
    %c0_i32_0 = arith.constant 0 : i32
    return %arg0, %c0_i32 : i32, i32
  }
  func.func @transform_1(%arg0: i32) -> (i32, i32) {
    %c0_i32 = arith.constant 0 : i32
    %c0_i32_0 = arith.constant 0 : i32
    return %arg0, %c0_i32 : i32, i32
  }
}

</mosaic_0001>

<llo_original>
// kernel: _passthrough_call.1
$region0: #{_passthrough_call.1}
  #allocation0 [shape = 'u32[]', space=smem, size = 0x4, offset = 0x4, fixed_abs, tag = 'smem constant byte address 0x4 - core index']
  #allocation1 [shape = 'u32[144,128]{1,0:T(1,128)}', space=vmem, size = 0x12000, scoped, tag = 'internal scratch']
  %s0 = inlined_call_operand.hbm [shape: f32[8,256], index: 0, kind: input, shape index: {}, may-alias: {0,1}]
  %s1 = inlined_call_operand.hbm [shape: f32[8,256], index: 1, kind: output, shape index: {}, may-alias: {0,1}]
  %s2 = sld [smem:[#allocation0]]
  $region2: #{_passthrough_call.1} parent=0
    _
  %s4 = ssub.s32 1, %s2
  %s5 = scalar_select 0, %s4, %s2

// kernel: _tiled_copy_call.1
$region0: #{_tiled_copy_call.1}
  #allocation0 [shape = 'u32[]', space=smem, size = 0x4, offset = 0x4, fixed_abs, tag = 'smem constant byte address 0x4 - core index']
  #allocation1 [shape = 'u32[144,128]{1,0:T(1,128)}', space=vmem, size = 0x12000, scoped, tag = 'internal scratch']
  %s0 = inlined_call_operand.vmem [shape: f32[1,2048], index: 0, kind: input, shape index: {}, may-alias: {0,1}]
  %s1 = inlined_call_operand.vmem [shape: f32[1,2048], index: 1, kind: output, shape index: {}, may-alias: {0,1}]
  %s2 = sld [smem:[#allocation0]]
  $region14: #{_tiled_copy_call.1} parent=0
    _
  %s4 = ssub.s32 1, %s2
  %s5 = scalar_select 0, %s4, %s2
  // Predicated region
  $region2: #{_tiled_copy_call.1} parent=0 // pred_check
    _
  $region3: #{_tiled_copy_call.1} parent=0 // pred_check_branch
    %7 = sbr.rel (0) target = $region5
  $region4: #{_tiled_copy_call.1} parent=0 // pred_region
    _
  $region5: #{_tiled_copy_call.1} parent=0 // pred_fallthru
    _
  %v8 = vld [vmem:[%s0] sm:$0xff]
  %v9 = vld [vmem:[%s0 + $0x8] sm:$0xff]
  %10 = vst [vmem:[%s1] sm:$0xff] %v8
  %11 = vst [vmem:[%s1 + $0x8] sm:$0xff] %v9
  // Predicated region
  $region6: #{_tiled_copy_call.1} parent=0 // pred_check
    _
  $region7: #{_tiled_copy_call.1} parent=0 // pred_check_branch
    %13 = sbr.rel (0) target = $region9
  $region8: #{_tiled_copy_call.1} parent=0 // pred_region
    _
  $region9: #{_tiled_copy_call.1} parent=0 // pred_fallthru
    _
  // Predicated region
  $region10: #{_tiled_copy_call.1} parent=0 // pred_check
    _
  $region11: #{_tiled_copy_call.1} parent=0 // pred_check_branch
    %15 = sbr.rel (0) target = $region13
  $region12: #{_tiled_copy_call.1} parent=0 // pred_region
    _
  $region13: #{_tiled_copy_call.1} parent=0 // pred_fallthru
    _

</llo_original>
